<compile_context>
chip_gen: v6e
topology: v6e:2x2x1
jax: 0.10.0
libtpu: 0.0.40
codegen_flags: <defaults>
</compile_context>

<pallas_src>
import jax
import jax.numpy as jnp
from jax.experimental import pallas as pl
from jax.experimental.pallas import tpu as pltpu


_SUBLANE = 8
_LANE = 128


def _round_up(x: int, m: int) -> int:
    return ((x + m - 1) // m) * m


def _vmem_capacity_bytes() -> int:
    """Physical VMEM of the local TPU; conservative fallback if unknown."""
    try:
        cap = getattr(pltpu.get_tpu_info(), "vmem_capacity_bytes", None)
        if cap:
            return int(cap)
    except Exception:
        pass
    return 64 * 1024 * 1024  # v7x per-TensorCore VMEM (smallest of v5e/v6e/v7x)


def _choose_tiles(rows: int, width: int, itemsize: int, max_tile_bytes: int):
    """Pick (row_block, width_block): lane-dense, multi-MiB, VMEM-safe tiles."""
    rows_p = _round_up(rows, _SUBLANE)
    width_p = _round_up(width, _LANE)

    row_bytes = width_p * itemsize
    if _SUBLANE * row_bytes <= max_tile_bytes:
        # Full-width tiles (unmasked lane-dense stores); grow rows up to budget.
        w_blk = width_p
        r_blk = min(rows_p, (max_tile_bytes // row_bytes) // _SUBLANE * _SUBLANE)
        r_blk = max(_SUBLANE, r_blk)
        # v7x megacore: keep >= 2 grid steps when there is enough work to split.
        if r_blk >= rows_p and rows_p > _SUBLANE:
            r_blk = _round_up(pl.cdiv(rows_p, 2), _SUBLANE)
    else:
        # Even an 8-row full-width stripe is over budget: chunk the lane axis.
        r_blk = _SUBLANE
        w_blk = max(_LANE,
                    (max_tile_bytes // (_SUBLANE * itemsize)) // _LANE * _LANE)
        w_blk = min(w_blk, width_p)
    return r_blk, w_blk


def _dropout2d_kernel(mask_ref, z_ref, o_ref):
    # mask_ref: (r_blk, 1)        per-channel keep * 1/(1-p) factor
    # z_ref/o_ref: (r_blk, w_blk) streamed real plane tile
    o_ref[...] = z_ref[...] * mask_ref[...]


def _masked_scale(zf: jax.Array, mask: jax.Array) -> jax.Array:
    """zf: (rows, width) real plane; mask: (rows,) per-row scale. Pallas call."""
    rows, width = zf.shape
    itemsize = zf.dtype.itemsize

    vmem_cap = _vmem_capacity_bytes()
    # Scoped VMEM: generous on 128 MiB parts, ~40 MiB on v7x (64 MiB parts).
    vmem_limit = min((vmem_cap * 5) // 8, 96 * 1024 * 1024)
    # Double-buffered input + output => ~4x tile bytes live; keep headroom.
    max_tile_bytes = max(1 << 20, vmem_limit // 5)
    max_tile_bytes = min(max_tile_bytes, 8 << 20)

    r_blk, w_blk = _choose_tiles(rows, width, itemsize, max_tile_bytes)
    rows_p = _round_up(rows, r_blk)
    width_p = _round_up(width, w_blk)

    if (rows_p, width_p) != (rows, width):
        zf = jnp.pad(zf, ((0, rows_p - rows), (0, width_p - width)))
    mask = mask.astype(zf.dtype)
    if rows_p != mask.shape[0]:
        mask = jnp.pad(mask, (0, rows_p - mask.shape[0]))
    mask = mask.reshape(rows_p, 1)

    grid = (rows_p // r_blk, width_p // w_blk)

    out = pl.pallas_call(
        _dropout2d_kernel,
        out_shape=jax.ShapeDtypeStruct((rows_p, width_p), zf.dtype),
        grid_spec=pltpu.PrefetchScalarGridSpec(
            num_scalar_prefetch=0,
            grid=grid,
            in_specs=[
                # Tiny mask block: index constant along the inner (lane) grid
                # axis, so it is only DMA'd when the row block changes.
                pl.BlockSpec((r_blk, 1), lambda i, j: (i, 0)),
                pl.BlockSpec((r_blk, w_blk), lambda i, j: (i, j)),
            ],
            out_specs=pl.BlockSpec((r_blk, w_blk), lambda i, j: (i, j)),
        ),
        compiler_params=pltpu.CompilerParams(
            dimension_semantics=("parallel", "parallel"),
            vmem_limit_bytes=int(vmem_limit),
        ),
    )(mask, zf)

    if (rows_p, width_p) != (rows, width):
        out = out[:rows, :width]
    return out


def dropout2d_complex(z: jax.Array, p: float, key: jax.Array,
                      training: bool = True) -> jax.Array:
    """Channel dropout on an NCHW tensor (complex or real), torchcvnn semantics."""
    if z.ndim != 4:
        raise ValueError(f"expected NCHW input, got shape {z.shape}")
    N, C, H, W = z.shape

    if (not training) or p <= 0.0:
        return z
    if p >= 1.0:
        # Every channel is dropped; avoid inf * 0 -> NaN from the 1/(1-p) scale.
        return jnp.zeros_like(z)

    NC, HW = N * C, H * W
    keep = jax.random.bernoulli(key, 1.0 - p, (NC,))
    scale = 1.0 / (1.0 - p)

    is_complex = jnp.issubdtype(z.dtype, jnp.complexfloating)
    if is_complex:
        if z.dtype == jnp.complex128:
            raise NotImplementedError("complex128 not supported on TPU Pallas")
        plane_dtype = jnp.float32
        # One interleaved real plane per row: [re, im, re, im, ...].
        zf = jnp.stack((jnp.real(z), jnp.imag(z)), axis=-1)
        zf = zf.astype(plane_dtype).reshape(NC, 2 * HW)
    else:
        plane_dtype = z.dtype
        zf = z.reshape(NC, HW)

    mask = keep.astype(plane_dtype) * jnp.asarray(scale, plane_dtype)
    out = _masked_scale(zf, mask)

    if is_complex:
        out = out.reshape(N, C, H, W, 2)
        return jax.lax.complex(out[..., 0], out[..., 1]).astype(z.dtype)
    return out.reshape(N, C, H, W).astype(z.dtype)


if __name__ == "__main__":
    key = jax.random.PRNGKey(0)
    k_re, k_im, k_drop = jax.random.split(key, 3)

    N, C, H, W = 2, 4, 16, 16
    z = (jax.random.normal(k_re, (N, C, H, W), dtype=jnp.float32)
         + 1j * jax.random.normal(k_im, (N, C, H, W), dtype=jnp.float32)
         ).astype(jnp.complex64)

    p = 0.5
    out = dropout2d_complex(z, p, k_drop, training=True)
    out = jax.block_until_ready(out)

    # Pure-JAX reference: identical per-(n, c) mask applied outside the kernel.
    keep = jax.random.bernoulli(k_drop, 1.0 - p, (N * C,)).reshape(N, C)
    mask_ref = (keep.astype(jnp.float32) / (1.0 - p))[:, :, None, None]
    ref = (mask_ref * z).astype(jnp.complex64)

    assert out.shape == z.shape and out.dtype == z.dtype
    assert jnp.allclose(out, ref, atol=1e-6), "mismatch vs reference"

    # Eval mode is the identity.
    assert jnp.array_equal(dropout2d_complex(z, p, k_drop, training=False), z)

    print("KERNEL_OK")
</pallas_src>

<mosaic_0001>
module attributes {stable_mosaic.version = 11 : i64} {
  func.func @_dropout2d_kernel(%arg0: i32, %arg1: i32, %arg2: memref<8x1xf32, #tpu.memory_space<vmem>>, %arg3: memref<8x512xf32, #tpu.memory_space<vmem>>, %arg4: memref<8x512xf32, #tpu.memory_space<vmem>>) attributes {dimension_semantics = [#tpu.dimension_semantics<parallel>, #tpu.dimension_semantics<parallel>], iteration_bounds = array<i64: 1, 1>, scalar_prefetch = 0 : i64, scratch_operands = 0 : i64, tpu.core_type = #tpu.core_type<tc>, window_params = [{transform_indices = @transform_0, window_bounds = array<i64: 8, 1>}, {transform_indices = @transform_1, window_bounds = array<i64: 8, 512>}, {transform_indices = @transform_2, window_bounds = array<i64: 8, 512>}]} {
    %c0 = arith.constant 0 : index
    %c0_0 = arith.constant 0 : index
    %0 = vector.load %arg3[%c0, %c0_0] : memref<8x512xf32, #tpu.memory_space<vmem>>, vector<8x512xf32>
    %c0_1 = arith.constant 0 : index
    %c0_2 = arith.constant 0 : index
    %1 = vector.load %arg2[%c0_1, %c0_2] : memref<8x1xf32, #tpu.memory_space<vmem>>, vector<8x1xf32>
    %2 = vector.broadcast %1 : vector<8x1xf32> to vector<8x512xf32>
    %3 = arith.mulf %0, %2 : vector<8x512xf32>
    %c0_3 = arith.constant 0 : index
    %c0_4 = arith.constant 0 : index
    %4 = vector.load %arg4[%c0_3, %c0_4] : memref<8x512xf32, #tpu.memory_space<vmem>>, vector<8x512xf32>
    tpu.vector_store %arg4[%c0_3, %c0_4], %3 {strides = array<i32>} : memref<8x512xf32, #tpu.memory_space<vmem>>, vector<8x512xf32>,
    return
  }
  func.func @transform_0(%arg0: i32, %arg1: i32) -> (i32, i32) {
    %c0_i32 = arith.constant 0 : i32
    %c0_i32_0 = arith.constant 0 : i32
    return %arg0, %c0_i32 : i32, i32
  }
  func.func @transform_1(%arg0: i32, %arg1: i32) -> (i32, i32) {
    %c0_i32 = arith.constant 0 : i32
    return %arg0, %arg1 : i32, i32
  }
  func.func @transform_2(%arg0: i32, %arg1: i32) -> (i32, i32) {
    %c0_i32 = arith.constant 0 : i32
    return %arg0, %arg1 : i32, i32
  }
}

</mosaic_0001>

<llo_original>
// kernel: tpu_custom_call.1
$region0: #{tpu_custom_call.1}
  #allocation0 [shape = 'u32[]', space=smem, size = 0x4, offset = 0x4, fixed_abs, tag = 'smem constant byte address 0x4 - core index']
  #allocation1 [shape = 'u32[144,128]{1,0:T(1,128)}', space=vmem, size = 0x12000, scoped, tag = 'internal scratch']
  %s0 = inlined_call_operand.vmem [shape: f32[8,1], index: 0, kind: input, shape index: {}]
  %s1 = inlined_call_operand.hbm [shape: f32[8,512], index: 1, kind: input, shape index: {}]
  %s2 = inlined_call_operand.hbm [shape: f32[8,512], index: 2, kind: output, shape index: {}]
  %s3 = sld [smem:[#allocation0]]
  $region22: #{tpu_custom_call.1} parent=0
    _
  %s5 = ssub.s32 1, %s3
  %s6 = scalar_select 0, %s5, %s3
  $region1: #{tpu_custom_call.1} parent=0
    #allocation2 [shape = 'u8[16384]{0}', space=vmem, size = 0x4000, scoped, tag = 'input window, operand 1, single buffered']
    #allocation3 [shape = 's32[1]{0}', space=sflag, size = 0x4, scoped, tag = 'scoped memory for tpu_custom_call.1']
    #allocation4 [shape = 's32[1]{0}', space=sflag, size = 0x4, scoped, tag = 'scoped memory for tpu_custom_call.1']
    #allocation5 [shape = 'u8[16384]{0}', space=vmem, size = 0x4000, scoped, tag = 'output window, operand 0, single buffered']
    %7 = vsyncpa [#allocation3], 0
    %8 = vsyncpa [#allocation4], 0
    // Predicated region
    $region2: #{tpu_custom_call.1} parent=1 // pred_check
      _
    $region3: #{tpu_custom_call.1} parent=1 // pred_check_branch
      %10 = sbr.rel (0) target = $region5
    $region4: #{tpu_custom_call.1} parent=1 // pred_region
      _
    $region5: #{tpu_custom_call.1} parent=1 // pred_fallthru
      _
    // Predicated region
    $region6: #{tpu_custom_call.1} parent=1 // pred_check
      _
    $region7: #{tpu_custom_call.1} parent=1 // pred_check_branch
      %12 = sbr.rel (0) target = $region9
    $region8: #{tpu_custom_call.1} parent=1 // pred_region
      %s14 = ssub.s32 512, 512
      %15 = vsyncadd [#allocation3], %s14
      %s17 = sshll.u32 [#allocation2], 4
      %s18 = int_to_ptr.vmem [resolvable:$true] %s17
      %20 = dma.hbm_to_vmem [thread:$0]  %s1, 512, %s18, [#allocation3]
    $region9: #{tpu_custom_call.1} parent=1 // pred_fallthru
      _
    // Predicated region
    $region10: #{tpu_custom_call.1} parent=1 // pred_check
      _
    $region11: #{tpu_custom_call.1} parent=1 // pred_check_branch
      %22 = sbr.rel (0) target = $region13
    $region12: #{tpu_custom_call.1} parent=1 // pred_region
      %23 = dma.done [#allocation3], 512
    $region13: #{tpu_custom_call.1} parent=1 // pred_fallthru
      _
    %v24 = vld [vmem:[#allocation2] sm:$0xff]
    %v25 = vld [vmem:[#allocation2 + $0x8] sm:$0xff]
    %v26 = vld [vmem:[#allocation2 + $0x10] sm:$0xff]
    %v27 = vld [vmem:[#allocation2 + $0x18] sm:$0xff]
    %v28 = vld [vmem:[%s0] sm:$0xff]
    %30 = vset.pattern.permute.xlu0 0
    %31 = vperm.xlu0 %30, %v28
    %v32 = vpop.permute.xlu0 %31
    %v34 = vmul.f32 %v24, %v32
    %v35 = vmul.f32 %v25, %v32
    %v36 = vmul.f32 %v26, %v32
    %v37 = vmul.f32 %v27, %v32
    %38 = vst [vmem:[#allocation5] sm:$0xff] %v34
    %39 = vst [vmem:[#allocation5 + $0x8] sm:$0xff] %v35
    %40 = vst [vmem:[#allocation5 + $0x10] sm:$0xff] %v36
    %41 = vst [vmem:[#allocation5 + $0x18] sm:$0xff] %v37
    // Predicated region
    $region14: #{tpu_custom_call.1} parent=1 // pred_check
      _
    $region15: #{tpu_custom_call.1} parent=1 // pred_check_branch
      %43 = sbr.rel (0) target = $region17
    $region16: #{tpu_custom_call.1} parent=1 // pred_region
      %s45 = ssub.s32 512, 512
      %46 = vsyncadd [#allocation4], %s45
      %s48 = sshll.u32 [#allocation5], 4
      %s49 = int_to_ptr.vmem [resolvable:$true] %s48
      %51 = dma.vmem_to_hbm [thread:$0]  %s49, 512, %s2, [#allocation4]
    $region17: #{tpu_custom_call.1} parent=1 // pred_fallthru
      _
    // Predicated region
    $region18: #{tpu_custom_call.1} parent=1 // pred_check
      _
    $region19: #{tpu_custom_call.1} parent=1 // pred_check_branch
      %53 = sbr.rel (0) target = $region21
    $region20: #{tpu_custom_call.1} parent=1 // pred_region
      %54 = dma.done [#allocation4], 512
    $region21: #{tpu_custom_call.1} parent=1 // pred_fallthru
      _
    %55 = vsyncpa [#allocation3], 1
    %56 = vsyncpa [#allocation4], 1

</llo_original>
